<compile_context>
chip_gen: v5e
topology: v5e:2x2
jax: 0.10.0
libtpu: 0.0.40
codegen_flags: <defaults>
</compile_context>

<pallas_src>
import jax
import jax.numpy as jnp
from jax import lax
from jax.experimental import pallas as pl
from jax.experimental.pallas import tpu as pltpu


_NT = (((1,), (1,)), ((), ()))   # contract last dim of both operands (A @ B^T)
_TN = (((0,), (0,)), ((), ()))   # contract first dim of both operands (A^T @ B)

_MAX_TILE_B = 8192               # ~5 MiB total working set: fine on v5e/v6e/v7x


def _tail_layers(h, w2_ref, b2_ref, w3_ref, b3_ref, w4t_ref, b4_ref, o_ref):
    """Layers 2..4 on a feature-major bf16 activation h: (64, tile_b)."""
    h = jnp.dot(w2_ref[...], h, preferred_element_type=jnp.float32)      # (32, tile_b) f32
    h = jnp.maximum(h + b2_ref[...], 0.0).astype(jnp.bfloat16)
    h = jnp.dot(w3_ref[...], h, preferred_element_type=jnp.float32)      # (16, tile_b) f32
    h = jnp.maximum(h + b3_ref[...], 0.0)                                # keep f32 for the tail
    w4t = w4t_ref[...]                                                    # (16, out_dim) f32
    if w4t.shape[1] == 1:
        # out_dim == 1: VPU broadcast-multiply + XLU sublane reduce; avoids a
        # ~1/256-utilization MXU pass + result-FIFO pop every grid step.
        y = jnp.sum(h * w4t, axis=0, keepdims=True) + b4_ref[...]
    else:
        y = lax.dot_general(w4t.astype(jnp.bfloat16), h.astype(jnp.bfloat16),
                            _TN, preferred_element_type=jnp.float32) + b4_ref[...]
    o_ref[...] = y.astype(o_ref.dtype)


def mlp_kernel_bm(x_ref, w1_ref, b1_ref, w2_ref, b2_ref, w3_ref, b3_ref,
                  w4t_ref, b4_ref, o_ref):
    """Preferred path: batch-major input block (tile_b, in_dim) read straight
    from HBM; layer 1 is an NT matmul producing feature-major activations."""
    x = x_ref[...].astype(jnp.bfloat16)                                   # (tile_b, in_dim)
    h = lax.dot_general(w1_ref[...], x, _NT,
                        preferred_element_type=jnp.float32)               # (64, tile_b) f32
    h = jnp.maximum(h + b1_ref[...], 0.0).astype(jnp.bfloat16)
    _tail_layers(h, w2_ref, b2_ref, w3_ref, b3_ref, w4t_ref, b4_ref, o_ref)


def mlp_kernel_fm(xT_ref, w1_ref, b1_ref, w2_ref, b2_ref, w3_ref, b3_ref,
                  w4t_ref, b4_ref, o_ref):
    """Fallback path: feature-major input block (in_dim, tile_b) (wrapper x.T)."""
    x = xT_ref[...].astype(jnp.bfloat16)                                  # (in_dim, tile_b)
    h = jnp.dot(w1_ref[...], x, preferred_element_type=jnp.float32)       # (64, tile_b) f32
    h = jnp.maximum(h + b1_ref[...], 0.0).astype(jnp.bfloat16)
    _tail_layers(h, w2_ref, b2_ref, w3_ref, b3_ref, w4t_ref, b4_ref, o_ref)


def _pick_tile(B):
    if B > _MAX_TILE_B:
        return _MAX_TILE_B
    if B >= 2048 and B % 256 == 0:
        return B // 2           # >= 2 grid steps so both v7x TensorCores get work
    return B                    # single full block (full-dim blocks are always layout-legal)


def mlp_forward(x, params, tile_b=None):
    """x: (B, input_dim) f32.  params: PyTorch-layout weights (out, in), biases (out, 1)."""
    B, in_dim = x.shape
    out_dim = params["w4"].shape[0]
    if tile_b is None:
        tile_b = _pick_tile(B)
    grid = (pl.cdiv(B, tile_b),)      # ragged last block is masked by Pallas

    # bf16 operands for the MXU layers (accumulation stays f32 in the kernel);
    # biases and the tiny last-layer weight stay f32 for the VPU/XLU tail.
    w1 = params["w1"].astype(jnp.bfloat16)
    w2 = params["w2"].astype(jnp.bfloat16)
    w3 = params["w3"].astype(jnp.bfloat16)
    w4t = params["w4"].T.astype(jnp.float32)          # (16, out_dim)
    weight_args = (w1, params["b1"], w2, params["b2"], w3, params["b3"], w4t, params["b4"])

    # Weights/biases: full-array blocks with constant index_map -> DMA'd once,
    # resident in VMEM for all grid steps.
    def resident(a):
        nd = a.ndim
        return pl.BlockSpec(a.shape, lambda i, _nd=nd: (0,) * _nd)

    weight_specs = [resident(a) for a in weight_args]
    out_spec = pl.BlockSpec((out_dim, tile_b), lambda i: (0, i))          # lane-dense store
    out_shape = jax.ShapeDtypeStruct((out_dim, B), jnp.float32)
    compiler_params = pltpu.CompilerParams(dimension_semantics=("parallel",))

    flops = 2 * B * (in_dim * 64 + 64 * 32 + 32 * 16 + 16 * out_dim)
    param_bytes = sum(int(p.size) * p.dtype.itemsize for p in weight_args)
    cost = pl.CostEstimate(flops=flops, transcendentals=0,
                           bytes_accessed=4 * B * (in_dim + out_dim) + param_bytes)

    try:
        yT = pl.pallas_call(
            mlp_kernel_bm,
            out_shape=out_shape,
            grid=grid,
            in_specs=[pl.BlockSpec((tile_b, in_dim), lambda i: (i, 0))] + weight_specs,
            out_specs=out_spec,
            compiler_params=compiler_params,
            cost_estimate=cost,
        )(x, *weight_args)
    except Exception:
        # Robust fallback: feature-major input via a wrapper-side transpose
        # (costs one extra HBM pass over x, but guaranteed-supported lowering).
        yT = pl.pallas_call(
            mlp_kernel_fm,
            out_shape=out_shape,
            grid=grid,
            in_specs=[pl.BlockSpec((in_dim, tile_b), lambda i: (0, i))] + weight_specs,
            out_specs=out_spec,
            compiler_params=compiler_params,
            cost_estimate=cost,
        )(x.T, *weight_args)

    if out_dim == 1:
        return yT.reshape(B, 1)     # (1, B) -> (B, 1): same memory order, no real transpose
    return yT.T


def init_params(key, input_dim, output_dim):
    """PyTorch nn.Linear layout + default init: W (out,in), b (out,1), U[-1/sqrt(fan_in), ...]."""
    dims = [(input_dim, 64), (64, 32), (32, 16), (16, output_dim)]
    params = {}
    keys = jax.random.split(key, 2 * len(dims))
    for i, (fan_in, fan_out) in enumerate(dims):
        bound = 1.0 / float(fan_in) ** 0.5
        w = jax.random.uniform(keys[2 * i], (fan_out, fan_in),
                               minval=-bound, maxval=bound, dtype=jnp.float32)
        b = jax.random.uniform(keys[2 * i + 1], (fan_out, 1),
                               minval=-bound, maxval=bound, dtype=jnp.float32)
        params[f"w{i + 1}"] = w
        params[f"b{i + 1}"] = b
    return params


def reference_forward(x, params):
    h = jnp.maximum(x @ params["w1"].T + params["b1"].T, 0.0)
    h = jnp.maximum(h @ params["w2"].T + params["b2"].T, 0.0)
    h = jnp.maximum(h @ params["w3"].T + params["b3"].T, 0.0)
    return h @ params["w4"].T + params["b4"].T


if __name__ == "__main__":
    key = jax.random.PRNGKey(0)
    k_x, k_p = jax.random.split(key)

    batch, input_dim, output_dim = 8, 12, 1   # kaggle-bike-style feature count
    x = jax.random.normal(k_x, (batch, input_dim), dtype=jnp.float32)
    params = init_params(k_p, input_dim, output_dim)

    out = jax.block_until_ready(mlp_forward(x, params))
    ref = reference_forward(x, params)

    assert out.shape == (batch, output_dim)
    # bf16 matmul operands (f32 accumulation) -> compare to the f32 reference loosely.
    assert jnp.allclose(out, ref, atol=5e-2, rtol=5e-2), "mismatch vs JAX reference"

    print("KERNEL_OK")
</pallas_src>

<mosaic_0001>
module attributes {stable_mosaic.version = 11 : i64} {
  func.func @mlp_kernel_bm(%arg0: i32, %arg1: memref<8x12xf32, #tpu.memory_space<vmem>>, %arg2: memref<64x12xbf16, #tpu.memory_space<vmem>>, %arg3: memref<64x1xf32, #tpu.memory_space<vmem>>, %arg4: memref<32x64xbf16, #tpu.memory_space<vmem>>, %arg5: memref<32x1xf32, #tpu.memory_space<vmem>>, %arg6: memref<16x32xbf16, #tpu.memory_space<vmem>>, %arg7: memref<16x1xf32, #tpu.memory_space<vmem>>, %arg8: memref<16x1xf32, #tpu.memory_space<vmem>>, %arg9: memref<1x1xf32, #tpu.memory_space<vmem>>, %arg10: memref<1x8xf32, #tpu.memory_space<vmem>>) attributes {dimension_semantics = [#tpu.dimension_semantics<parallel>], iteration_bounds = array<i64: 1>, scalar_prefetch = 0 : i64, scratch_operands = 0 : i64, tpu.core_type = #tpu.core_type<tc>, window_params = [{transform_indices = @transform_0, window_bounds = array<i64: 8, 12>}, {pipeline_mode = #tpu.pipeline_mode<synchronous>, transform_indices = @transform_1, window_bounds = array<i64: 64, 12>}, {pipeline_mode = #tpu.pipeline_mode<synchronous>, transform_indices = @transform_2, window_bounds = array<i64: 64, 1>}, {pipeline_mode = #tpu.pipeline_mode<synchronous>, transform_indices = @transform_3, window_bounds = array<i64: 32, 64>}, {pipeline_mode = #tpu.pipeline_mode<synchronous>, transform_indices = @transform_4, window_bounds = array<i64: 32, 1>}, {pipeline_mode = #tpu.pipeline_mode<synchronous>, transform_indices = @transform_5, window_bounds = array<i64: 16, 32>}, {pipeline_mode = #tpu.pipeline_mode<synchronous>, transform_indices = @transform_6, window_bounds = array<i64: 16, 1>}, {pipeline_mode = #tpu.pipeline_mode<synchronous>, transform_indices = @transform_7, window_bounds = array<i64: 16, 1>}, {pipeline_mode = #tpu.pipeline_mode<synchronous>, transform_indices = @transform_8, window_bounds = array<i64: 1, 1>}, {transform_indices = @transform_9, window_bounds = array<i64: 1, 8>}]} {
    %c0 = arith.constant 0 : index
    %c0_0 = arith.constant 0 : index
    %0 = vector.load %arg1[%c0, %c0_0] : memref<8x12xf32, #tpu.memory_space<vmem>>, vector<8x12xf32>
    %1 = arith.truncf %0 : vector<8x12xf32> to vector<8x12xbf16>
    %c0_1 = arith.constant 0 : index
    %c0_2 = arith.constant 0 : index
    %2 = vector.load %arg2[%c0_1, %c0_2] : memref<64x12xbf16, #tpu.memory_space<vmem>>, vector<64x12xbf16>
    %cst = arith.constant dense<0.000000e+00> : vector<64x8xf32>
    %3 = tpu.matmul %2, %1, %cst {dimension_numbers = #tpu.dot_dimension_numbers<[1], [1], [0], [0], [0, 0, 1, 0], [], []>} : vector<64x12xbf16>, vector<8x12xbf16>, vector<64x8xf32> -> vector<64x8xf32>
    %c0_3 = arith.constant 0 : index
    %c0_4 = arith.constant 0 : index
    %4 = vector.load %arg3[%c0_3, %c0_4] : memref<64x1xf32, #tpu.memory_space<vmem>>, vector<64x1xf32>
    %5 = vector.broadcast %4 : vector<64x1xf32> to vector<64x8xf32>
    %6 = arith.addf %3, %5 : vector<64x8xf32>
    %cst_5 = arith.constant 0.000000e+00 : f32
    %7 = vector.broadcast %cst_5 : f32 to vector<64x8xf32>
    %8 = arith.maximumf %6, %7 : vector<64x8xf32>
    %9 = arith.truncf %8 : vector<64x8xf32> to vector<64x8xbf16>
    %c0_6 = arith.constant 0 : index
    %c0_7 = arith.constant 0 : index
    %10 = vector.load %arg4[%c0_6, %c0_7] : memref<32x64xbf16, #tpu.memory_space<vmem>>, vector<32x64xbf16>
    %cst_8 = arith.constant dense<0.000000e+00> : vector<32x8xf32>
    %11 = tpu.matmul %10, %9, %cst_8 {dimension_numbers = #tpu.dot_dimension_numbers<[1], [0], [0], [1], [0, 0, 1, 1], [], []>} : vector<32x64xbf16>, vector<64x8xbf16>, vector<32x8xf32> -> vector<32x8xf32>
    %c0_9 = arith.constant 0 : index
    %c0_10 = arith.constant 0 : index
    %12 = vector.load %arg5[%c0_9, %c0_10] : memref<32x1xf32, #tpu.memory_space<vmem>>, vector<32x1xf32>
    %13 = vector.broadcast %12 : vector<32x1xf32> to vector<32x8xf32>
    %14 = arith.addf %11, %13 : vector<32x8xf32>
    %cst_11 = arith.constant 0.000000e+00 : f32
    %15 = vector.broadcast %cst_11 : f32 to vector<32x8xf32>
    %16 = arith.maximumf %14, %15 : vector<32x8xf32>
    %17 = arith.truncf %16 : vector<32x8xf32> to vector<32x8xbf16>
    %c0_12 = arith.constant 0 : index
    %c0_13 = arith.constant 0 : index
    %18 = vector.load %arg6[%c0_12, %c0_13] : memref<16x32xbf16, #tpu.memory_space<vmem>>, vector<16x32xbf16>
    %cst_14 = arith.constant dense<0.000000e+00> : vector<16x8xf32>
    %19 = tpu.matmul %18, %17, %cst_14 {dimension_numbers = #tpu.dot_dimension_numbers<[1], [0], [0], [1], [0, 0, 1, 1], [], []>} : vector<16x32xbf16>, vector<32x8xbf16>, vector<16x8xf32> -> vector<16x8xf32>
    %c0_15 = arith.constant 0 : index
    %c0_16 = arith.constant 0 : index
    %20 = vector.load %arg7[%c0_15, %c0_16] : memref<16x1xf32, #tpu.memory_space<vmem>>, vector<16x1xf32>
    %21 = vector.broadcast %20 : vector<16x1xf32> to vector<16x8xf32>
    %22 = arith.addf %19, %21 : vector<16x8xf32>
    %cst_17 = arith.constant 0.000000e+00 : f32
    %23 = vector.broadcast %cst_17 : f32 to vector<16x8xf32>
    %24 = arith.maximumf %22, %23 : vector<16x8xf32>
    %c0_18 = arith.constant 0 : index
    %c0_19 = arith.constant 0 : index
    %25 = vector.load %arg8[%c0_18, %c0_19] : memref<16x1xf32, #tpu.memory_space<vmem>>, vector<16x1xf32>
    %26 = vector.broadcast %25 : vector<16x1xf32> to vector<16x8xf32>
    %27 = arith.mulf %24, %26 : vector<16x8xf32>
    %cst_20 = arith.constant dense<0.000000e+00> : vector<8xf32>
    %28 = vector.multi_reduction <add>, %27, %cst_20 [0] : vector<16x8xf32> to vector<8xf32>
    %29 = vector.shape_cast %28 : vector<8xf32> to vector<1x8xf32>
    %c0_21 = arith.constant 0 : index
    %c0_22 = arith.constant 0 : index
    %30 = vector.load %arg9[%c0_21, %c0_22] : memref<1x1xf32, #tpu.memory_space<vmem>>, vector<1x1xf32>
    %31 = vector.broadcast %30 : vector<1x1xf32> to vector<1x8xf32>
    %32 = arith.addf %29, %31 : vector<1x8xf32>
    %c0_23 = arith.constant 0 : index
    %c0_24 = arith.constant 0 : index
    %33 = vector.load %arg10[%c0_23, %c0_24] : memref<1x8xf32, #tpu.memory_space<vmem>>, vector<1x8xf32>
    tpu.vector_store %arg10[%c0_23, %c0_24], %32 {strides = array<i32>} : memref<1x8xf32, #tpu.memory_space<vmem>>, vector<1x8xf32>,
    return
  }
  func.func @transform_0(%arg0: i32) -> (i32, i32) {
    %c0_i32 = arith.constant 0 : i32
    %c0_i32_0 = arith.constant 0 : i32
    return %arg0, %c0_i32 : i32, i32
  }
  func.func @transform_1(%arg0: i32) -> (i32, i32) {
    %c0_i32 = arith.constant 0 : i32
    %c0_i32_0 = arith.constant 0 : i32
    %c0_i32_1 = arith.constant 0 : i32
    return %c0_i32, %c0_i32_0 : i32, i32
  }
  func.func @transform_2(%arg0: i32) -> (i32, i32) {
    %c0_i32 = arith.constant 0 : i32
    %c0_i32_0 = arith.constant 0 : i32
    %c0_i32_1 = arith.constant 0 : i32
    return %c0_i32, %c0_i32_0 : i32, i32
  }
  func.func @transform_3(%arg0: i32) -> (i32, i32) {
    %c0_i32 = arith.constant 0 : i32
    %c0_i32_0 = arith.constant 0 : i32
    %c0_i32_1 = arith.constant 0 : i32
    return %c0_i32, %c0_i32_0 : i32, i32
  }
  func.func @transform_4(%arg0: i32) -> (i32, i32) {
    %c0_i32 = arith.constant 0 : i32
    %c0_i32_0 = arith.constant 0 : i32
    %c0_i32_1 = arith.constant 0 : i32
    return %c0_i32, %c0_i32_0 : i32, i32
  }
  func.func @transform_5(%arg0: i32) -> (i32, i32) {
    %c0_i32 = arith.constant 0 : i32
    %c0_i32_0 = arith.constant 0 : i32
    %c0_i32_1 = arith.constant 0 : i32
    return %c0_i32, %c0_i32_0 : i32, i32
  }
  func.func @transform_6(%arg0: i32) -> (i32, i32) {
    %c0_i32 = arith.constant 0 : i32
    %c0_i32_0 = arith.constant 0 : i32
    %c0_i32_1 = arith.constant 0 : i32
    return %c0_i32, %c0_i32_0 : i32, i32
  }
  func.func @transform_7(%arg0: i32) -> (i32, i32) {
    %c0_i32 = arith.constant 0 : i32
    %c0_i32_0 = arith.constant 0 : i32
    %c0_i32_1 = arith.constant 0 : i32
    return %c0_i32, %c0_i32_0 : i32, i32
  }
  func.func @transform_8(%arg0: i32) -> (i32, i32) {
    %c0_i32 = arith.constant 0 : i32
    %c0_i32_0 = arith.constant 0 : i32
    %c0_i32_1 = arith.constant 0 : i32
    return %c0_i32, %c0_i32_0 : i32, i32
  }
  func.func @transform_9(%arg0: i32) -> (i32, i32) {
    %c0_i32 = arith.constant 0 : i32
    %c0_i32_0 = arith.constant 0 : i32
    return %c0_i32, %arg0 : i32, i32
  }
}

module attributes {stable_mosaic.version = 11 : i64} {
  func.func @mlp_kernel_fm(%arg0: i32, %arg1: memref<12x8xf32, #tpu.memory_space<vmem>>, %arg2: memref<64x12xbf16, #tpu.memory_space<vmem>>, %arg3: memref<64x1xf32, #tpu.memory_space<vmem>>, %arg4: memref<32x64xbf16, #tpu.memory_space<vmem>>, %arg5: memref<32x1xf32, #tpu.memory_space<vmem>>, %arg6: memref<16x32xbf16, #tpu.memory_space<vmem>>, %arg7: memref<16x1xf32, #tpu.memory_space<vmem>>, %arg8: memref<16x1xf32, #tpu.memory_space<vmem>>, %arg9: memref<1x1xf32, #tpu.memory_space<vmem>>, %arg10: memref<1x8xf32, #tpu.memory_space<vmem>>) attributes {dimension_semantics = [#tpu.dimension_semantics<parallel>], iteration_bounds = array<i64: 1>, scalar_prefetch = 0 : i64, scratch_operands = 0 : i64, tpu.core_type = #tpu.core_type<tc>, window_params = [{transform_indices = @transform_0, window_bounds = array<i64: 12, 8>}, {pipeline_mode = #tpu.pipeline_mode<synchronous>, transform_indices = @transform_1, window_bounds = array<i64: 64, 12>}, {pipeline_mode = #tpu.pipeline_mode<synchronous>, transform_indices = @transform_2, window_bounds = array<i64: 64, 1>}, {pipeline_mode = #tpu.pipeline_mode<synchronous>, transform_indices = @transform_3, window_bounds = array<i64: 32, 64>}, {pipeline_mode = #tpu.pipeline_mode<synchronous>, transform_indices = @transform_4, window_bounds = array<i64: 32, 1>}, {pipeline_mode = #tpu.pipeline_mode<synchronous>, transform_indices = @transform_5, window_bounds = array<i64: 16, 32>}, {pipeline_mode = #tpu.pipeline_mode<synchronous>, transform_indices = @transform_6, window_bounds = array<i64: 16, 1>}, {pipeline_mode = #tpu.pipeline_mode<synchronous>, transform_indices = @transform_7, window_bounds = array<i64: 16, 1>}, {pipeline_mode = #tpu.pipeline_mode<synchronous>, transform_indices = @transform_8, window_bounds = array<i64: 1, 1>}, {transform_indices = @transform_9, window_bounds = array<i64: 1, 8>}]} {
    %c0 = arith.constant 0 : index
    %c0_0 = arith.constant 0 : index
    %0 = vector.load %arg1[%c0, %c0_0] : memref<12x8xf32, #tpu.memory_space<vmem>>, vector<12x8xf32>
    %1 = arith.truncf %0 : vector<12x8xf32> to vector<12x8xbf16>
    %c0_1 = arith.constant 0 : index
    %c0_2 = arith.constant 0 : index
    %2 = vector.load %arg2[%c0_1, %c0_2] : memref<64x12xbf16, #tpu.memory_space<vmem>>, vector<64x12xbf16>
    %cst = arith.constant dense<0.000000e+00> : vector<64x8xf32>
    %3 = tpu.matmul %2, %1, %cst {dimension_numbers = #tpu.dot_dimension_numbers<[1], [0], [0], [1], [0, 0, 1, 1], [], []>} : vector<64x12xbf16>, vector<12x8xbf16>, vector<64x8xf32> -> vector<64x8xf32>
    %c0_3 = arith.constant 0 : index
    %c0_4 = arith.constant 0 : index
    %4 = vector.load %arg3[%c0_3, %c0_4] : memref<64x1xf32, #tpu.memory_space<vmem>>, vector<64x1xf32>
    %5 = vector.broadcast %4 : vector<64x1xf32> to vector<64x8xf32>
    %6 = arith.addf %3, %5 : vector<64x8xf32>
    %cst_5 = arith.constant 0.000000e+00 : f32
    %7 = vector.broadcast %cst_5 : f32 to vector<64x8xf32>
    %8 = arith.maximumf %6, %7 : vector<64x8xf32>
    %9 = arith.truncf %8 : vector<64x8xf32> to vector<64x8xbf16>
    %c0_6 = arith.constant 0 : index
    %c0_7 = arith.constant 0 : index
    %10 = vector.load %arg4[%c0_6, %c0_7] : memref<32x64xbf16, #tpu.memory_space<vmem>>, vector<32x64xbf16>
    %cst_8 = arith.constant dense<0.000000e+00> : vector<32x8xf32>
    %11 = tpu.matmul %10, %9, %cst_8 {dimension_numbers = #tpu.dot_dimension_numbers<[1], [0], [0], [1], [0, 0, 1, 1], [], []>} : vector<32x64xbf16>, vector<64x8xbf16>, vector<32x8xf32> -> vector<32x8xf32>
    %c0_9 = arith.constant 0 : index
    %c0_10 = arith.constant 0 : index
    %12 = vector.load %arg5[%c0_9, %c0_10] : memref<32x1xf32, #tpu.memory_space<vmem>>, vector<32x1xf32>
    %13 = vector.broadcast %12 : vector<32x1xf32> to vector<32x8xf32>
    %14 = arith.addf %11, %13 : vector<32x8xf32>
    %cst_11 = arith.constant 0.000000e+00 : f32
    %15 = vector.broadcast %cst_11 : f32 to vector<32x8xf32>
    %16 = arith.maximumf %14, %15 : vector<32x8xf32>
    %17 = arith.truncf %16 : vector<32x8xf32> to vector<32x8xbf16>
    %c0_12 = arith.constant 0 : index
    %c0_13 = arith.constant 0 : index
    %18 = vector.load %arg6[%c0_12, %c0_13] : memref<16x32xbf16, #tpu.memory_space<vmem>>, vector<16x32xbf16>
    %cst_14 = arith.constant dense<0.000000e+00> : vector<16x8xf32>
    %19 = tpu.matmul %18, %17, %cst_14 {dimension_numbers = #tpu.dot_dimension_numbers<[1], [0], [0], [1], [0, 0, 1, 1], [], []>} : vector<16x32xbf16>, vector<32x8xbf16>, vector<16x8xf32> -> vector<16x8xf32>
    %c0_15 = arith.constant 0 : index
    %c0_16 = arith.constant 0 : index
    %20 = vector.load %arg7[%c0_15, %c0_16] : memref<16x1xf32, #tpu.memory_space<vmem>>, vector<16x1xf32>
    %21 = vector.broadcast %20 : vector<16x1xf32> to vector<16x8xf32>
    %22 = arith.addf %19, %21 : vector<16x8xf32>
    %cst_17 = arith.constant 0.000000e+00 : f32
    %23 = vector.broadcast %cst_17 : f32 to vector<16x8xf32>
    %24 = arith.maximumf %22, %23 : vector<16x8xf32>
    %c0_18 = arith.constant 0 : index
    %c0_19 = arith.constant 0 : index
    %25 = vector.load %arg8[%c0_18, %c0_19] : memref<16x1xf32, #tpu.memory_space<vmem>>, vector<16x1xf32>
    %26 = vector.broadcast %25 : vector<16x1xf32> to vector<16x8xf32>
    %27 = arith.mulf %24, %26 : vector<16x8xf32>
    %cst_20 = arith.constant dense<0.000000e+00> : vector<8xf32>
    %28 = vector.multi_reduction <add>, %27, %cst_20 [0] : vector<16x8xf32> to vector<8xf32>
    %29 = vector.shape_cast %28 : vector<8xf32> to vector<1x8xf32>
    %c0_21 = arith.constant 0 : index
    %c0_22 = arith.constant 0 : index
    %30 = vector.load %arg9[%c0_21, %c0_22] : memref<1x1xf32, #tpu.memory_space<vmem>>, vector<1x1xf32>
    %31 = vector.broadcast %30 : vector<1x1xf32> to vector<1x8xf32>
    %32 = arith.addf %29, %31 : vector<1x8xf32>
    %c0_23 = arith.constant 0 : index
    %c0_24 = arith.constant 0 : index
    %33 = vector.load %arg10[%c0_23, %c0_24] : memref<1x8xf32, #tpu.memory_space<vmem>>, vector<1x8xf32>
    tpu.vector_store %arg10[%c0_23, %c0_24], %32 {strides = array<i32>} : memref<1x8xf32, #tpu.memory_space<vmem>>, vector<1x8xf32>,
    return
  }
  func.func @transform_0(%arg0: i32) -> (i32, i32) {
    %c0_i32 = arith.constant 0 : i32
    %c0_i32_0 = arith.constant 0 : i32
    return %c0_i32, %arg0 : i32, i32
  }
  func.func @transform_1(%arg0: i32) -> (i32, i32) {
    %c0_i32 = arith.constant 0 : i32
    %c0_i32_0 = arith.constant 0 : i32
    %c0_i32_1 = arith.constant 0 : i32
    return %c0_i32, %c0_i32_0 : i32, i32
  }
  func.func @transform_2(%arg0: i32) -> (i32, i32) {
    %c0_i32 = arith.constant 0 : i32
    %c0_i32_0 = arith.constant 0 : i32
    %c0_i32_1 = arith.constant 0 : i32
    return %c0_i32, %c0_i32_0 : i32, i32
  }
  func.func @transform_3(%arg0: i32) -> (i32, i32) {
    %c0_i32 = arith.constant 0 : i32
    %c0_i32_0 = arith.constant 0 : i32
    %c0_i32_1 = arith.constant 0 : i32
    return %c0_i32, %c0_i32_0 : i32, i32
  }
  func.func @transform_4(%arg0: i32) -> (i32, i32) {
    %c0_i32 = arith.constant 0 : i32
    %c0_i32_0 = arith.constant 0 : i32
    %c0_i32_1 = arith.constant 0 : i32
    return %c0_i32, %c0_i32_0 : i32, i32
  }
  func.func @transform_5(%arg0: i32) -> (i32, i32) {
    %c0_i32 = arith.constant 0 : i32
    %c0_i32_0 = arith.constant 0 : i32
    %c0_i32_1 = arith.constant 0 : i32
    return %c0_i32, %c0_i32_0 : i32, i32
  }
  func.func @transform_6(%arg0: i32) -> (i32, i32) {
    %c0_i32 = arith.constant 0 : i32
    %c0_i32_0 = arith.constant 0 : i32
    %c0_i32_1 = arith.constant 0 : i32
    return %c0_i32, %c0_i32_0 : i32, i32
  }
  func.func @transform_7(%arg0: i32) -> (i32, i32) {
    %c0_i32 = arith.constant 0 : i32
    %c0_i32_0 = arith.constant 0 : i32
    %c0_i32_1 = arith.constant 0 : i32
    return %c0_i32, %c0_i32_0 : i32, i32
  }
  func.func @transform_8(%arg0: i32) -> (i32, i32) {
    %c0_i32 = arith.constant 0 : i32
    %c0_i32_0 = arith.constant 0 : i32
    %c0_i32_1 = arith.constant 0 : i32
    return %c0_i32, %c0_i32_0 : i32, i32
  }
  func.func @transform_9(%arg0: i32) -> (i32, i32) {
    %c0_i32 = arith.constant 0 : i32
    %c0_i32_0 = arith.constant 0 : i32
    return %c0_i32, %arg0 : i32, i32
  }
}

</mosaic_0001>

<llo_original>
// kernel: tpu_custom_call.1
$region0: #{tpu_custom_call.1}
  #allocation0 [shape = 'u32[]', space=smem, size = 0x4, offset = 0x4, fixed_abs, tag = 'smem constant byte address 0x4 - core index']
  #allocation1 [shape = 'u32[72,128]{1,0:T(1,128)}', space=vmem, size = 0x9000, scoped, tag = 'internal scratch']
  #allocation2 [shape = 'f32[1,1]{1,0:T(1,128)S(1)}', space=vmem, size = 0x200, scoped, tag = 'scoped memory for tpu_custom_call.1']
  %s0 = inlined_call_operand.vmem [shape: f32[8,12], index: 0, kind: input, shape index: {}]
  %s1 = inlined_call_operand.vmem [shape: bf16[64,12], index: 1, kind: input, shape index: {}]
  %s2 = inlined_call_operand.vmem [shape: f32[64,1], index: 2, kind: input, shape index: {}]
  %s3 = inlined_call_operand.vmem [shape: bf16[32,64], index: 3, kind: input, shape index: {}]
  %s4 = inlined_call_operand.vmem [shape: f32[32,1], index: 4, kind: input, shape index: {}]
  %s5 = inlined_call_operand.vmem [shape: bf16[16,32], index: 5, kind: input, shape index: {}]
  %s6 = inlined_call_operand.vmem [shape: f32[16,1], index: 6, kind: input, shape index: {}]
  %s7 = inlined_call_operand.vmem [shape: f32[16,1], index: 7, kind: input, shape index: {}]
  %s8 = inlined_call_operand.<no memory space> [shape: f32[1,1], index: 8, kind: input, shape index: {}]
  %s9 = inlined_call_operand.hbm [shape: f32[1,8], index: 9, kind: output, shape index: {}]
  %s10 = sld [smem:[#allocation0]]
  $region46: #{tpu_custom_call.1} parent=0
    _
  %s12 = ssub.s32 1, %s10
  %s13 = scalar_select 0, %s12, %s10
  %v14 = vstv %s8
  %15 = vst [vmem:[#allocation2] sm:$0x1] %v14
  $region1: #{tpu_custom_call.1} parent=0
    #allocation3 [shape = 'u8[512]{0}', space=vmem, size = 0x400, scoped, tag = 'output window, operand 0, single buffered']
    #allocation4 [shape = 's32[1]{0}', space=sflag, size = 0x4, scoped, tag = 'scoped memory for tpu_custom_call.1']
    %16 = vsyncpa [#allocation4], 0
    // Predicated region
    $region2: #{tpu_custom_call.1} parent=1 // pred_check
      _
    $region3: #{tpu_custom_call.1} parent=1 // pred_check_branch
      %18 = sbr.rel (0) target = $region5
    $region4: #{tpu_custom_call.1} parent=1 // pred_region
      _
    $region5: #{tpu_custom_call.1} parent=1 // pred_fallthru
      _
    // Predicated region
    $region6: #{tpu_custom_call.1} parent=1 // pred_check
      _
    $region7: #{tpu_custom_call.1} parent=1 // pred_check_branch
      %20 = sbr.rel (0) target = $region9
    $region8: #{tpu_custom_call.1} parent=1 // pred_region
      _
    $region9: #{tpu_custom_call.1} parent=1 // pred_fallthru
      _
    // Predicated region
    $region10: #{tpu_custom_call.1} parent=1 // pred_check
      _
    $region11: #{tpu_custom_call.1} parent=1 // pred_check_branch
      %22 = sbr.rel (0) target = $region13
    $region12: #{tpu_custom_call.1} parent=1 // pred_region
      _
    $region13: #{tpu_custom_call.1} parent=1 // pred_fallthru
      _
    // Predicated region
    $region14: #{tpu_custom_call.1} parent=1 // pred_check
      _
    $region15: #{tpu_custom_call.1} parent=1 // pred_check_branch
      %24 = sbr.rel (0) target = $region17
    $region16: #{tpu_custom_call.1} parent=1 // pred_region
      _
    $region17: #{tpu_custom_call.1} parent=1 // pred_fallthru
      _
    // Predicated region
    $region18: #{tpu_custom_call.1} parent=1 // pred_check
      _
    $region19: #{tpu_custom_call.1} parent=1 // pred_check_branch
      %26 = sbr.rel (0) target = $region21
    $region20: #{tpu_custom_call.1} parent=1 // pred_region
      _
    $region21: #{tpu_custom_call.1} parent=1 // pred_fallthru
      _
    // Predicated region
    $region22: #{tpu_custom_call.1} parent=1 // pred_check
      _
    $region23: #{tpu_custom_call.1} parent=1 // pred_check_branch
      %28 = sbr.rel (0) target = $region25
    $region24: #{tpu_custom_call.1} parent=1 // pred_region
      _
    $region25: #{tpu_custom_call.1} parent=1 // pred_fallthru
      _
    // Predicated region
    $region26: #{tpu_custom_call.1} parent=1 // pred_check
      _
    $region27: #{tpu_custom_call.1} parent=1 // pred_check_branch
      %30 = sbr.rel (0) target = $region29
    $region28: #{tpu_custom_call.1} parent=1 // pred_region
      _
    $region29: #{tpu_custom_call.1} parent=1 // pred_fallthru
      _
    // Predicated region
    $region30: #{tpu_custom_call.1} parent=1 // pred_check
      _
    $region31: #{tpu_custom_call.1} parent=1 // pred_check_branch
      %32 = sbr.rel (0) target = $region33
    $region32: #{tpu_custom_call.1} parent=1 // pred_region
      _
    $region33: #{tpu_custom_call.1} parent=1 // pred_fallthru
      _
    // Predicated region
    $region34: #{tpu_custom_call.1} parent=1 // pred_check
      _
    $region35: #{tpu_custom_call.1} parent=1 // pred_check_branch
      %34 = sbr.rel (0) target = $region37
    $region36: #{tpu_custom_call.1} parent=1 // pred_region
      _
    $region37: #{tpu_custom_call.1} parent=1 // pred_fallthru
      _
    %v36 = vld [vmem:[%s0] sm:$0xff]
    %v37 = vpack.c.bf16 %v36, %v36
    %v38 = vld [vmem:[%s1] sm:$0xf]
    %v39 = vld [vmem:[%s1 + $0x4] sm:$0xf]
    %v40 = vld [vmem:[%s1 + $0x8] sm:$0xf]
    %v41 = vld [vmem:[%s1 + $0xc] sm:$0xf]
    %v42 = vld [vmem:[%s1 + $0x10] sm:$0xf]
    %v43 = vld [vmem:[%s1 + $0x14] sm:$0xf]
    %v44 = vld [vmem:[%s1 + $0x18] sm:$0xf]
    %v45 = vld [vmem:[%s1 + $0x1c] sm:$0xf]
    %v46 = vld [vmem:[%s2] sm:$0xff]
    %v47 = vld [vmem:[%s2 + $0x8] sm:$0xff]
    %v48 = vld [vmem:[%s2 + $0x10] sm:$0xff]
    %v49 = vld [vmem:[%s2 + $0x18] sm:$0xff]
    %v50 = vld [vmem:[%s2 + $0x20] sm:$0xff]
    %v51 = vld [vmem:[%s2 + $0x28] sm:$0xff]
    %v52 = vld [vmem:[%s2 + $0x30] sm:$0xff]
    %v53 = vld [vmem:[%s2 + $0x38] sm:$0xff]
    %55 = vset.pattern.permute.xlu0 0
    %56 = vperm.xlu0 %55, %v46
    %v57 = vpop.permute.xlu0 %56
    %60 = vset.pattern.permute.xlu0 0
    %61 = vperm.xlu0 %60, %v47
    %v62 = vpop.permute.xlu0 %61
    %65 = vset.pattern.permute.xlu0 0
    %66 = vperm.xlu0 %65, %v48
    %v67 = vpop.permute.xlu0 %66
    %70 = vset.pattern.permute.xlu0 0
    %71 = vperm.xlu0 %70, %v49
    %v72 = vpop.permute.xlu0 %71
    %75 = vset.pattern.permute.xlu0 0
    %76 = vperm.xlu0 %75, %v50
    %v77 = vpop.permute.xlu0 %76
    %80 = vset.pattern.permute.xlu0 0
    %81 = vperm.xlu0 %80, %v51
    %v82 = vpop.permute.xlu0 %81
    %85 = vset.pattern.permute.xlu0 0
    %86 = vperm.xlu0 %85, %v52
    %v87 = vpop.permute.xlu0 %86
    %90 = vset.pattern.permute.xlu0 0
    %91 = vperm.xlu0 %90, %v53
    %v92 = vpop.permute.xlu0 %91
    %v102 = vunpack.c.l.b16 %v38
    %v103 = vunpack.c.l.b16 %v39
    %v104 = vunpack.c.l.b16 %v40
    %v105 = vunpack.c.l.b16 %v41
    %v106 = vunpack.c.l.b16 %v42
    %v107 = vunpack.c.l.b16 %v43
    %v108 = vunpack.c.l.b16 %v44
    %v109 = vunpack.c.l.b16 %v45
    %v110 = vpack.c.b16 %v103, %v102
    %v111 = vpack.c.b16 %v105, %v104
    %v112 = vpack.c.b16 %v107, %v106
    %v113 = vpack.c.b16 %v109, %v108
    %vm114 = vcmask 97280
    %v116 = vsel %vm114, %v110, 0
    %v119 = vsel %vm114, %v111, 0
    %v122 = vsel %vm114, %v112, 0
    %v125 = vsel %vm114, %v113, 0
    %v128 = vsel %vm114, %v37, 0
    %130 = vmatpush.bf16.xpose.msra.mxu0 0
    %131 = vmatpush.bf16.xpose.msra.mxu0 0
    %132 = vmatpush.bf16.xpose.msra.mxu0 0
    %133 = vmatpush.bf16.xpose.msra.mxu0 0
    %134 = vmatpush.bf16.xpose.msra.mxu0 0
    %135 = vmatpush.bf16.xpose.msra.mxu0 0
    %136 = vmatpush.bf16.xpose.msra.mxu0 0
    %137 = vmatpush.bf16.xpose.msra.mxu0 %v128
    %138 = vmatmul.bf16.gmra.mxu0 %v116
    %v139 = vpop.f32.mrf.mxu0
    %v140 = vadd.f32 %v57, %v139
    %v141 = vpop.f32.mrf.mxu0
    %v142 = vadd.f32 %v62, %v141
    %143 = vmatmul.bf16.gmra.mxu0 %v119
    %v144 = vpop.f32.mrf.mxu0
    %v145 = vadd.f32 %v67, %v144
    %v146 = vpop.f32.mrf.mxu0
    %v147 = vadd.f32 %v72, %v146
    %148 = vmatmul.bf16.gmra.mxu0 %v122
    %v149 = vpop.f32.mrf.mxu0
    %v150 = vadd.f32 %v77, %v149
    %v151 = vpop.f32.mrf.mxu0
    %v152 = vadd.f32 %v82, %v151
    %153 = vmatmul.bf16.gmra.mxu0 %v125
    %v154 = vpop.f32.mrf.mxu0
    %v155 = vadd.f32 %v87, %v154
    %v156 = vpop.f32.mrf.mxu0
    %v157 = vadd.f32 %v92, %v156
    %158 = vdwg.mxu0
    %v159 = vmax.f32 %v140, 0.0
    %v160 = vmax.f32 %v142, 0.0
    %v161 = vmax.f32 %v145, 0.0
    %v162 = vmax.f32 %v147, 0.0
    %v163 = vmax.f32 %v150, 0.0
    %v164 = vmax.f32 %v152, 0.0
    %v165 = vmax.f32 %v155, 0.0
    %v166 = vmax.f32 %v157, 0.0
    %v167 = vpack.c.bf16 %v160, %v159
    %v168 = vpack.c.bf16 %v162, %v161
    %v169 = vpack.c.bf16 %v164, %v163
    %v170 = vpack.c.bf16 %v166, %v165
    %v171 = vld [vmem:[%s3] sm:$0xf]
    %v172 = vld [vmem:[%s3 + $0x4] sm:$0xf]
    %v173 = vld [vmem:[%s3 + $0x8] sm:$0xf]
    %v174 = vld [vmem:[%s3 + $0xc] sm:$0xf]
    %v175 = vld [vmem:[%s4] sm:$0xff]
    %v176 = vld [vmem:[%s4 + $0x8] sm:$0xff]
    %v177 = vld [vmem:[%s4 + $0x10] sm:$0xff]
    %v178 = vld [vmem:[%s4 + $0x18] sm:$0xff]
    %180 = vset.pattern.permute.xlu0 0
    %181 = vperm.xlu0 %180, %v175
    %v182 = vpop.permute.xlu0 %181
    %185 = vset.pattern.permute.xlu0 0
    %186 = vperm.xlu0 %185, %v176
    %v187 = vpop.permute.xlu0 %186
    %190 = vset.pattern.permute.xlu0 0
    %191 = vperm.xlu0 %190, %v177
    %v192 = vpop.permute.xlu0 %191
    %195 = vset.pattern.permute.xlu0 0
    %196 = vperm.xlu0 %195, %v178
    %v197 = vpop.permute.xlu0 %196
    %v203 = vunpack.c.l.b16 %v171
    %v204 = vunpack.c.l.b16 %v172
    %v205 = vunpack.c.l.b16 %v173
    %v206 = vunpack.c.l.b16 %v174
    %v207 = vpack.c.b16 %v204, %v203
    %v208 = vpack.c.b16 %v206, %v205
    %vm209 = vcmask 523264
    %v211 = vsel %vm209, %v207, 0
    %v214 = vsel %vm209, %v208, 0
    %216 = vmatpush.bf16.msra.mxu0 0
    %217 = vmatpush.bf16.msra.mxu0 0
    %218 = vmatpush.bf16.msra.mxu0 0
    %219 = vmatpush.bf16.msra.mxu0 0
    %220 = vmatpush.bf16.msra.mxu0 %v170
    %221 = vmatpush.bf16.msra.mxu0 %v169
    %222 = vmatpush.bf16.msra.mxu0 %v168
    %223 = vmatpush.bf16.msra.mxu0 %v167
    %224 = vmatmul.bf16.gmra.mxu0 %v211
    %v225 = vpop.f32.mrf.mxu0
    %v226 = vadd.f32 %v182, %v225
    %v227 = vpop.f32.mrf.mxu0
    %v228 = vadd.f32 %v187, %v227
    %229 = vmatmul.bf16.gmra.mxu0 %v214
    %v230 = vpop.f32.mrf.mxu0
    %v231 = vadd.f32 %v192, %v230
    %v232 = vpop.f32.mrf.mxu0
    %v233 = vadd.f32 %v197, %v232
    %234 = vdwg.mxu0
    %v235 = vmax.f32 %v226, 0.0
    %v236 = vmax.f32 %v228, 0.0
    %v237 = vmax.f32 %v231, 0.0
    %v238 = vmax.f32 %v233, 0.0
    %v239 = vpack.c.bf16 %v236, %v235
    %v240 = vpack.c.bf16 %v238, %v237
    %v241 = vld [vmem:[%s5] sm:$0xf]
    %v242 = vld [vmem:[%s5 + $0x4] sm:$0xf]
    %v243 = vld [vmem:[%s6] sm:$0xff]
    %v244 = vld [vmem:[%s6 + $0x8] sm:$0xff]
    %246 = vset.pattern.permute.xlu0 0
    %247 = vperm.xlu0 %246, %v243
    %v248 = vpop.permute.xlu0 %247
    %251 = vset.pattern.permute.xlu0 0
    %252 = vperm.xlu0 %251, %v244
    %v253 = vpop.permute.xlu0 %252
    %v257 = vunpack.c.l.b16 %v241
    %v258 = vunpack.c.l.b16 %v242
    %v259 = vpack.c.b16 %v258, %v257
    %vm260 = vcmask 261120
    %v262 = vsel %vm260, %v259, 0
    %264 = vmatpush.bf16.msra.mxu0 0
    %265 = vmatpush.bf16.msra.mxu0 0
    %266 = vmatpush.bf16.msra.mxu0 0
    %267 = vmatpush.bf16.msra.mxu0 0
    %268 = vmatpush.bf16.msra.mxu0 0
    %269 = vmatpush.bf16.msra.mxu0 0
    %270 = vmatpush.bf16.msra.mxu0 %v240
    %271 = vmatpush.bf16.msra.mxu0 %v239
    %272 = vmatmul.bf16.gmra.mxu0 %v262
    %v273 = vpop.f32.mrf.mxu0
    %v274 = vadd.f32 %v248, %v273
    %v275 = vpop.f32.mrf.mxu0
    %v276 = vadd.f32 %v253, %v275
    %277 = vdwg.mxu0
    %v278 = vmax.f32 %v274, 0.0
    %v279 = vmax.f32 %v276, 0.0
    %v280 = vld [vmem:[%s7] sm:$0xff]
    %v281 = vld [vmem:[%s7 + $0x8] sm:$0xff]
    %283 = vset.pattern.permute.xlu0 0
    %284 = vperm.xlu0 %283, %v280
    %v285 = vpop.permute.xlu0 %284
    %288 = vset.pattern.permute.xlu0 0
    %289 = vperm.xlu0 %288, %v281
    %v290 = vpop.permute.xlu0 %289
    %v292 = vmul.f32 %v278, %v285
    %v293 = vmul.f32 %v279, %v290
    %vm294 = vcmask 64512
    %v295 = vsel %vm294, %v292, 0.0
    %v296 = vsel %vm294, %v293, 0.0
    %v297 = vadd.f32 %v295, %v296
    %v298 = vrot.slane %v297, 4
    %v299 = vadd.f32 %v297, %v298
    %v300 = vrot.slane %v299, 2
    %v301 = vadd.f32 %v299, %v300
    %v302 = vrot.slane %v301, 1
    %v303 = vadd.f32 %v301, %v302
    %v304 = vld [vmem:[#allocation2] sm:$0x1]
    %306 = vset.pattern.permute.xlu0 0
    %307 = vperm.xlu0 %306, %v304
    %v308 = vpop.permute.xlu0 %307
    %v310 = vperm.slane %v308, 0
    %v311 = vadd.f32 %v303, %v310
    %vm312 = vcmask 57344
    %313 = vst.msk [vmem:[#allocation3] sm:$0x1] %vm312, %v311
    // Predicated region
    $region38: #{tpu_custom_call.1} parent=1 // pred_check
      _
    $region39: #{tpu_custom_call.1} parent=1 // pred_check_branch
      %315 = sbr.rel (0) target = $region41
    $region40: #{tpu_custom_call.1} parent=1 // pred_region
      %317 = vsyncadd [#allocation4], 0
      %s319 = sshll.u32 [#allocation3], 4
      %s320 = int_to_ptr.vmem [resolvable:$true] %s319
      %s321 = sshll.u32 %s9, 4
      %s322 = int_to_ptr.hbm [resolvable:$true] %s321
      %324 = dma.vmem_to_hbm [thread:$0]  %s320, 16, %s322, [#allocation4]
    $region41: #{tpu_custom_call.1} parent=1 // pred_fallthru
      _
    // Predicated region
    $region42: #{tpu_custom_call.1} parent=1 // pred_check
      _
    $region43: #{tpu_custom_call.1} parent=1 // pred_check_branch
      %326 = sbr.rel (0) target = $region45
    $region44: #{tpu_custom_call.1} parent=1 // pred_region
      %328 = dma.done [#allocation4], 16
    $region45: #{tpu_custom_call.1} parent=1 // pred_fallthru
      _
    %329 = vsyncpa [#allocation4], 1

// kernel: tpu_custom_call.1
$region0: #{tpu_custom_call.1}
  #allocation0 [shape = 'u32[]', space=smem, size = 0x4, offset = 0x4, fixed_abs, tag = 'smem constant byte address 0x4 - core index']
  #allocation1 [shape = 'u32[72,128]{1,0:T(1,128)}', space=vmem, size = 0x9000, scoped, tag = 'internal scratch']
  #allocation2 [shape = 'f32[1,1]{1,0:T(1,128)S(1)}', space=vmem, size = 0x200, scoped, tag = 'scoped memory for tpu_custom_call.1']
  %s0 = inlined_call_operand.vmem [shape: f32[12,8], index: 0, kind: input, shape index: {}]
  %s1 = inlined_call_operand.vmem [shape: bf16[64,12], index: 1, kind: input, shape index: {}]
  %s2 = inlined_call_operand.vmem [shape: f32[64,1], index: 2, kind: input, shape index: {}]
  %s3 = inlined_call_operand.vmem [shape: bf16[32,64], index: 3, kind: input, shape index: {}]
  %s4 = inlined_call_operand.vmem [shape: f32[32,1], index: 4, kind: input, shape index: {}]
  %s5 = inlined_call_operand.vmem [shape: bf16[16,32], index: 5, kind: input, shape index: {}]
  %s6 = inlined_call_operand.vmem [shape: f32[16,1], index: 6, kind: input, shape index: {}]
  %s7 = inlined_call_operand.vmem [shape: f32[16,1], index: 7, kind: input, shape index: {}]
  %s8 = inlined_call_operand.<no memory space> [shape: f32[1,1], index: 8, kind: input, shape index: {}]
  %s9 = inlined_call_operand.hbm [shape: f32[1,8], index: 9, kind: output, shape index: {}]
  %s10 = sld [smem:[#allocation0]]
  $region46: #{tpu_custom_call.1} parent=0
    _
  %s12 = ssub.s32 1, %s10
  %s13 = scalar_select 0, %s12, %s10
  %v14 = vstv %s8
  %15 = vst [vmem:[#allocation2] sm:$0x1] %v14
  $region1: #{tpu_custom_call.1} parent=0
    #allocation3 [shape = 'u8[512]{0}', space=vmem, size = 0x400, scoped, tag = 'output window, operand 0, single buffered']
    #allocation4 [shape = 's32[1]{0}', space=sflag, size = 0x4, scoped, tag = 'scoped memory for tpu_custom_call.1']
    %16 = vsyncpa [#allocation4], 0
    // Predicated region
    $region2: #{tpu_custom_call.1} parent=1 // pred_check
      _
    $region3: #{tpu_custom_call.1} parent=1 // pred_check_branch
      %18 = sbr.rel (0) target = $region5
    $region4: #{tpu_custom_call.1} parent=1 // pred_region
      _
    $region5: #{tpu_custom_call.1} parent=1 // pred_fallthru
      _
    // Predicated region
    $region6: #{tpu_custom_call.1} parent=1 // pred_check
      _
    $region7: #{tpu_custom_call.1} parent=1 // pred_check_branch
      %20 = sbr.rel (0) target = $region9
    $region8: #{tpu_custom_call.1} parent=1 // pred_region
      _
    $region9: #{tpu_custom_call.1} parent=1 // pred_fallthru
      _
    // Predicated region
    $region10: #{tpu_custom_call.1} parent=1 // pred_check
      _
    $region11: #{tpu_custom_call.1} parent=1 // pred_check_branch
      %22 = sbr.rel (0) target = $region13
    $region12: #{tpu_custom_call.1} parent=1 // pred_region
      _
    $region13: #{tpu_custom_call.1} parent=1 // pred_fallthru
      _
    // Predicated region
    $region14: #{tpu_custom_call.1} parent=1 // pred_check
      _
    $region15: #{tpu_custom_call.1} parent=1 // pred_check_branch
      %24 = sbr.rel (0) target = $region17
    $region16: #{tpu_custom_call.1} parent=1 // pred_region
      _
    $region17: #{tpu_custom_call.1} parent=1 // pred_fallthru
      _
    // Predicated region
    $region18: #{tpu_custom_call.1} parent=1 // pred_check
      _
    $region19: #{tpu_custom_call.1} parent=1 // pred_check_branch
      %26 = sbr.rel (0) target = $region21
    $region20: #{tpu_custom_call.1} parent=1 // pred_region
      _
    $region21: #{tpu_custom_call.1} parent=1 // pred_fallthru
      _
    // Predicated region
    $region22: #{tpu_custom_call.1} parent=1 // pred_check
      _
    $region23: #{tpu_custom_call.1} parent=1 // pred_check_branch
      %28 = sbr.rel (0) target = $region25
    $region24: #{tpu_custom_call.1} parent=1 // pred_region
      _
    $region25: #{tpu_custom_call.1} parent=1 // pred_fallthru
      _
    // Predicated region
    $region26: #{tpu_custom_call.1} parent=1 // pred_check
      _
    $region27: #{tpu_custom_call.1} parent=1 // pred_check_branch
      %30 = sbr.rel (0) target = $region29
    $region28: #{tpu_custom_call.1} parent=1 // pred_region
      _
    $region29: #{tpu_custom_call.1} parent=1 // pred_fallthru
      _
    // Predicated region
    $region30: #{tpu_custom_call.1} parent=1 // pred_check
      _
    $region31: #{tpu_custom_call.1} parent=1 // pred_check_branch
      %32 = sbr.rel (0) target = $region33
    $region32: #{tpu_custom_call.1} parent=1 // pred_region
      _
    $region33: #{tpu_custom_call.1} parent=1 // pred_fallthru
      _
    // Predicated region
    $region34: #{tpu_custom_call.1} parent=1 // pred_check
      _
    $region35: #{tpu_custom_call.1} parent=1 // pred_check_branch
      %34 = sbr.rel (0) target = $region37
    $region36: #{tpu_custom_call.1} parent=1 // pred_region
      _
    $region37: #{tpu_custom_call.1} parent=1 // pred_fallthru
      _
    %v36 = vld [vmem:[%s0] sm:$0xff]
    %v37 = vld [vmem:[%s0 + $0x8] sm:$0xf]
    %v38 = vpack.c.bf16 %v37, %v36
    %v39 = vld [vmem:[%s1] sm:$0xf]
    %v40 = vld [vmem:[%s1 + $0x4] sm:$0xf]
    %v41 = vld [vmem:[%s1 + $0x8] sm:$0xf]
    %v42 = vld [vmem:[%s1 + $0xc] sm:$0xf]
    %v43 = vld [vmem:[%s1 + $0x10] sm:$0xf]
    %v44 = vld [vmem:[%s1 + $0x14] sm:$0xf]
    %v45 = vld [vmem:[%s1 + $0x18] sm:$0xf]
    %v46 = vld [vmem:[%s1 + $0x1c] sm:$0xf]
    %v47 = vld [vmem:[%s2] sm:$0xff]
    %v48 = vld [vmem:[%s2 + $0x8] sm:$0xff]
    %v49 = vld [vmem:[%s2 + $0x10] sm:$0xff]
    %v50 = vld [vmem:[%s2 + $0x18] sm:$0xff]
    %v51 = vld [vmem:[%s2 + $0x20] sm:$0xff]
    %v52 = vld [vmem:[%s2 + $0x28] sm:$0xff]
    %v53 = vld [vmem:[%s2 + $0x30] sm:$0xff]
    %v54 = vld [vmem:[%s2 + $0x38] sm:$0xff]
    %56 = vset.pattern.permute.xlu0 0
    %57 = vperm.xlu0 %56, %v47
    %v58 = vpop.permute.xlu0 %57
    %61 = vset.pattern.permute.xlu0 0
    %62 = vperm.xlu0 %61, %v48
    %v63 = vpop.permute.xlu0 %62
    %66 = vset.pattern.permute.xlu0 0
    %67 = vperm.xlu0 %66, %v49
    %v68 = vpop.permute.xlu0 %67
    %71 = vset.pattern.permute.xlu0 0
    %72 = vperm.xlu0 %71, %v50
    %v73 = vpop.permute.xlu0 %72
    %76 = vset.pattern.permute.xlu0 0
    %77 = vperm.xlu0 %76, %v51
    %v78 = vpop.permute.xlu0 %77
    %81 = vset.pattern.permute.xlu0 0
    %82 = vperm.xlu0 %81, %v52
    %v83 = vpop.permute.xlu0 %82
    %86 = vset.pattern.permute.xlu0 0
    %87 = vperm.xlu0 %86, %v53
    %v88 = vpop.permute.xlu0 %87
    %91 = vset.pattern.permute.xlu0 0
    %92 = vperm.xlu0 %91, %v54
    %v93 = vpop.permute.xlu0 %92
    %v103 = vunpack.c.l.b16 %v39
    %v104 = vunpack.c.l.b16 %v40
    %v105 = vunpack.c.l.b16 %v41
    %v106 = vunpack.c.l.b16 %v42
    %v107 = vunpack.c.l.b16 %v43
    %v108 = vunpack.c.l.b16 %v44
    %v109 = vunpack.c.l.b16 %v45
    %v110 = vunpack.c.l.b16 %v46
    %v111 = vpack.c.b16 %v104, %v103
    %v112 = vpack.c.b16 %v106, %v105
    %v113 = vpack.c.b16 %v108, %v107
    %v114 = vpack.c.b16 %v110, %v109
    %vm115 = vcmask 97280
    %v117 = vsel %vm115, %v111, 0
    %v120 = vsel %vm115, %v112, 0
    %v123 = vsel %vm115, %v113, 0
    %v126 = vsel %vm115, %v114, 0
    %vm128 = vcmask 1045504
    %v130 = vsel %vm128, %v38, 0
    %132 = vmatpush.bf16.msra.mxu0 0
    %133 = vmatpush.bf16.msra.mxu0 0
    %134 = vmatpush.bf16.msra.mxu0 0
    %135 = vmatpush.bf16.msra.mxu0 0
    %136 = vmatpush.bf16.msra.mxu0 0
    %137 = vmatpush.bf16.msra.mxu0 0
    %138 = vmatpush.bf16.msra.mxu0 0
    %139 = vmatpush.bf16.msra.mxu0 %v130
    %140 = vmatmul.bf16.gmra.mxu0 %v117
    %v141 = vpop.f32.mrf.mxu0
    %v142 = vadd.f32 %v58, %v141
    %v143 = vpop.f32.mrf.mxu0
    %v144 = vadd.f32 %v63, %v143
    %145 = vmatmul.bf16.gmra.mxu0 %v120
    %v146 = vpop.f32.mrf.mxu0
    %v147 = vadd.f32 %v68, %v146
    %v148 = vpop.f32.mrf.mxu0
    %v149 = vadd.f32 %v73, %v148
    %150 = vmatmul.bf16.gmra.mxu0 %v123
    %v151 = vpop.f32.mrf.mxu0
    %v152 = vadd.f32 %v78, %v151
    %v153 = vpop.f32.mrf.mxu0
    %v154 = vadd.f32 %v83, %v153
    %155 = vmatmul.bf16.gmra.mxu0 %v126
    %v156 = vpop.f32.mrf.mxu0
    %v157 = vadd.f32 %v88, %v156
    %v158 = vpop.f32.mrf.mxu0
    %v159 = vadd.f32 %v93, %v158
    %160 = vdwg.mxu0
    %v161 = vmax.f32 %v142, 0.0
    %v162 = vmax.f32 %v144, 0.0
    %v163 = vmax.f32 %v147, 0.0
    %v164 = vmax.f32 %v149, 0.0
    %v165 = vmax.f32 %v152, 0.0
    %v166 = vmax.f32 %v154, 0.0
    %v167 = vmax.f32 %v157, 0.0
    %v168 = vmax.f32 %v159, 0.0
    %v169 = vpack.c.bf16 %v162, %v161
    %v170 = vpack.c.bf16 %v164, %v163
    %v171 = vpack.c.bf16 %v166, %v165
    %v172 = vpack.c.bf16 %v168, %v167
    %v173 = vld [vmem:[%s3] sm:$0xf]
    %v174 = vld [vmem:[%s3 + $0x4] sm:$0xf]
    %v175 = vld [vmem:[%s3 + $0x8] sm:$0xf]
    %v176 = vld [vmem:[%s3 + $0xc] sm:$0xf]
    %v177 = vld [vmem:[%s4] sm:$0xff]
    %v178 = vld [vmem:[%s4 + $0x8] sm:$0xff]
    %v179 = vld [vmem:[%s4 + $0x10] sm:$0xff]
    %v180 = vld [vmem:[%s4 + $0x18] sm:$0xff]
    %182 = vset.pattern.permute.xlu0 0
    %183 = vperm.xlu0 %182, %v177
    %v184 = vpop.permute.xlu0 %183
    %187 = vset.pattern.permute.xlu0 0
    %188 = vperm.xlu0 %187, %v178
    %v189 = vpop.permute.xlu0 %188
    %192 = vset.pattern.permute.xlu0 0
    %193 = vperm.xlu0 %192, %v179
    %v194 = vpop.permute.xlu0 %193
    %197 = vset.pattern.permute.xlu0 0
    %198 = vperm.xlu0 %197, %v180
    %v199 = vpop.permute.xlu0 %198
    %v205 = vunpack.c.l.b16 %v173
    %v206 = vunpack.c.l.b16 %v174
    %v207 = vunpack.c.l.b16 %v175
    %v208 = vunpack.c.l.b16 %v176
    %v209 = vpack.c.b16 %v206, %v205
    %v210 = vpack.c.b16 %v208, %v207
    %vm211 = vcmask 523264
    %v213 = vsel %vm211, %v209, 0
    %v216 = vsel %vm211, %v210, 0
    %218 = vmatpush.bf16.msra.mxu0 0
    %219 = vmatpush.bf16.msra.mxu0 0
    %220 = vmatpush.bf16.msra.mxu0 0
    %221 = vmatpush.bf16.msra.mxu0 0
    %222 = vmatpush.bf16.msra.mxu0 %v172
    %223 = vmatpush.bf16.msra.mxu0 %v171
    %224 = vmatpush.bf16.msra.mxu0 %v170
    %225 = vmatpush.bf16.msra.mxu0 %v169
    %226 = vmatmul.bf16.gmra.mxu0 %v213
    %v227 = vpop.f32.mrf.mxu0
    %v228 = vadd.f32 %v184, %v227
    %v229 = vpop.f32.mrf.mxu0
    %v230 = vadd.f32 %v189, %v229
    %231 = vmatmul.bf16.gmra.mxu0 %v216
    %v232 = vpop.f32.mrf.mxu0
    %v233 = vadd.f32 %v194, %v232
    %v234 = vpop.f32.mrf.mxu0
    %v235 = vadd.f32 %v199, %v234
    %236 = vdwg.mxu0
    %v237 = vmax.f32 %v228, 0.0
    %v238 = vmax.f32 %v230, 0.0
    %v239 = vmax.f32 %v233, 0.0
    %v240 = vmax.f32 %v235, 0.0
    %v241 = vpack.c.bf16 %v238, %v237
    %v242 = vpack.c.bf16 %v240, %v239
    %v243 = vld [vmem:[%s5] sm:$0xf]
    %v244 = vld [vmem:[%s5 + $0x4] sm:$0xf]
    %v245 = vld [vmem:[%s6] sm:$0xff]
    %v246 = vld [vmem:[%s6 + $0x8] sm:$0xff]
    %248 = vset.pattern.permute.xlu0 0
    %249 = vperm.xlu0 %248, %v245
    %v250 = vpop.permute.xlu0 %249
    %253 = vset.pattern.permute.xlu0 0
    %254 = vperm.xlu0 %253, %v246
    %v255 = vpop.permute.xlu0 %254
    %v259 = vunpack.c.l.b16 %v243
    %v260 = vunpack.c.l.b16 %v244
    %v261 = vpack.c.b16 %v260, %v259
    %vm262 = vcmask 261120
    %v264 = vsel %vm262, %v261, 0
    %266 = vmatpush.bf16.msra.mxu0 0
    %267 = vmatpush.bf16.msra.mxu0 0
    %268 = vmatpush.bf16.msra.mxu0 0
    %269 = vmatpush.bf16.msra.mxu0 0
    %270 = vmatpush.bf16.msra.mxu0 0
    %271 = vmatpush.bf16.msra.mxu0 0
    %272 = vmatpush.bf16.msra.mxu0 %v242
    %273 = vmatpush.bf16.msra.mxu0 %v241
    %274 = vmatmul.bf16.gmra.mxu0 %v264
    %v275 = vpop.f32.mrf.mxu0
    %v276 = vadd.f32 %v250, %v275
    %v277 = vpop.f32.mrf.mxu0
    %v278 = vadd.f32 %v255, %v277
    %279 = vdwg.mxu0
    %v280 = vmax.f32 %v276, 0.0
    %v281 = vmax.f32 %v278, 0.0
    %v282 = vld [vmem:[%s7] sm:$0xff]
    %v283 = vld [vmem:[%s7 + $0x8] sm:$0xff]
    %285 = vset.pattern.permute.xlu0 0
    %286 = vperm.xlu0 %285, %v282
    %v287 = vpop.permute.xlu0 %286
    %290 = vset.pattern.permute.xlu0 0
    %291 = vperm.xlu0 %290, %v283
    %v292 = vpop.permute.xlu0 %291
    %v294 = vmul.f32 %v280, %v287
    %v295 = vmul.f32 %v281, %v292
    %vm296 = vcmask 64512
    %v297 = vsel %vm296, %v294, 0.0
    %v298 = vsel %vm296, %v295, 0.0
    %v299 = vadd.f32 %v297, %v298
    %v300 = vrot.slane %v299, 4
    %v301 = vadd.f32 %v299, %v300
    %v302 = vrot.slane %v301, 2
    %v303 = vadd.f32 %v301, %v302
    %v304 = vrot.slane %v303, 1
    %v305 = vadd.f32 %v303, %v304
    %v306 = vld [vmem:[#allocation2] sm:$0x1]
    %308 = vset.pattern.permute.xlu0 0
    %309 = vperm.xlu0 %308, %v306
    %v310 = vpop.permute.xlu0 %309
    %v312 = vperm.slane %v310, 0
    %v313 = vadd.f32 %v305, %v312
    %vm314 = vcmask 57344
    %315 = vst.msk [vmem:[#allocation3] sm:$0x1] %vm314, %v313
    // Predicated region
    $region38: #{tpu_custom_call.1} parent=1 // pred_check
      _
    $region39: #{tpu_custom_call.1} parent=1 // pred_check_branch
      %317 = sbr.rel (0) target = $region41
    $region40: #{tpu_custom_call.1} parent=1 // pred_region
      %319 = vsyncadd [#allocation4], 0
      %s321 = sshll.u32 [#allocation3], 4
      %s322 = int_to_ptr.vmem [resolvable:$true] %s321
      %s323 = sshll.u32 %s9, 4
      %s324 = int_to_ptr.hbm [resolvable:$true] %s323
      %326 = dma.vmem_to_hbm [thread:$0]  %s322, 16, %s324, [#allocation4]
    $region41: #{tpu_custom_call.1} parent=1 // pred_fallthru
      _
    // Predicated region
    $region42: #{tpu_custom_call.1} parent=1 // pred_check
      _
    $region43: #{tpu_custom_call.1} parent=1 // pred_check_branch
      %328 = sbr.rel (0) target = $region45
    $region44: #{tpu_custom_call.1} parent=1 // pred_region
      %330 = dma.done [#allocation4], 16
    $region45: #{tpu_custom_call.1} parent=1 // pred_fallthru
      _
    %331 = vsyncpa [#allocation4], 1

</llo_original>
